<compile_context>
chip_gen: v6e
topology: v6e:2x2x1
jax: 0.10.0
libtpu: 0.0.40
codegen_flags: <defaults>
</compile_context>

<pallas_src>
import jax
import jax.numpy as jnp
from jax.experimental import pallas as pl
from jax.experimental.pallas import tpu as pltpu

DROP_P = 0.1
N_IN = 9
HIDDEN = 270
HIDDEN_PAD = 384                      # 3 * 128 lanes
N_OUT = 2
_DROP_THRESHOLD = int(DROP_P * (1 << 32))   # keep iff bits >= threshold => P(keep)=1-p
_GOLDEN = 0x9E3779B9


def _round_up(x, m):
    return ((x + m - 1) // m) * m


def _mix32(x):
    """lowbias32-style integer hash, elementwise on uint32 (wraps)."""
    x = x ^ (x >> 16)
    x = x * jnp.uint32(0x7FEB352D)
    x = x ^ (x >> 15)
    x = x * jnp.uint32(0x846CA68B)
    x = x ^ (x >> 16)
    return x


def _dropout_keep_mask(global_row0, rows, cols, seed_u32):
    """Deterministic keep-mask: hash of (seed, global element index)."""
    row = jax.lax.broadcasted_iota(jnp.int32, (rows, cols), 0) + global_row0
    col = jax.lax.broadcasted_iota(jnp.int32, (rows, cols), 1)
    ctr = (row * cols + col).astype(jnp.uint32)
    bits = _mix32(_mix32(ctr ^ (seed_u32 * jnp.uint32(_GOLDEN))) + seed_u32)
    return bits >= jnp.uint32(_DROP_THRESHOLD)


def _net_kernel(seed_ref, x_ref, w1_ref, b1_ref, w2_ref, b2_ref, o_ref):
    tm = x_ref.shape[0]
    hpad = w1_ref.shape[1]

    # fc1 (the 1/(1-p) inverted-dropout scale is folded into w1/b1 host-side).
    h = jnp.dot(x_ref[...], w1_ref[...],
                preferred_element_type=jnp.float32) + b1_ref[...]

    # dropout(p=0.1, training) fused with relu: single select, integer threshold.
    seed_u = seed_ref[0].astype(jnp.uint32)
    keep = _dropout_keep_mask(pl.program_id(0) * tm, tm, hpad, seed_u)
    h = jnp.where(jnp.logical_and(keep, h > 0.0), h, 0.0)

    # fc2 + sigmoid.
    z = jnp.dot(h, w2_ref[...], preferred_element_type=jnp.float32) + b2_ref[...]
    o_ref[...] = 1.0 / (1.0 + jnp.exp(-z))


def prepare_params(w1, b1, w2, b2):
    """Pad params to lane-aligned shapes and fold the 1/(1-p) scale into fc1."""
    scale = 1.0 / (1.0 - DROP_P)
    w1p = jnp.zeros((N_IN, HIDDEN_PAD), jnp.float32).at[:, :HIDDEN].set(
        w1.astype(jnp.float32) * scale)
    b1p = jnp.zeros((1, HIDDEN_PAD), jnp.float32).at[0, :HIDDEN].set(
        b1.astype(jnp.float32) * scale)
    w2p = jnp.zeros((HIDDEN_PAD, N_OUT), jnp.float32).at[:HIDDEN, :].set(
        w2.astype(jnp.float32))
    b2p = b2.astype(jnp.float32).reshape(1, N_OUT)
    return w1p, b1p, w2p, b2p


def net_forward(x, w1, b1, w2, b2, seed, *, block_rows=1024):
    """Forward pass of Net. Pass a fresh `seed` every training step."""
    B = x.shape[0]
    w1p, b1p, w2p, b2p = prepare_params(w1, b1, w2, b2)

    tm = min(block_rows, _round_up(B, 8))        # rows per tile (multiple of 8)
    padded_b = _round_up(B, tm)
    x = x.astype(jnp.float32)
    if padded_b != B:
        x = jnp.pad(x, ((0, padded_b - B), (0, 0)))

    seed_arr = jnp.asarray([seed], dtype=jnp.int32)

    out = pl.pallas_call(
        _net_kernel,
        out_shape=jax.ShapeDtypeStruct((padded_b, N_OUT), jnp.float32),
        grid_spec=pltpu.PrefetchScalarGridSpec(
            num_scalar_prefetch=1,
            grid=(padded_b // tm,),
            in_specs=[
                pl.BlockSpec((tm, N_IN), lambda i, seed: (i, 0)),           # x rows stream
                pl.BlockSpec((N_IN, HIDDEN_PAD), lambda i, seed: (0, 0)),   # w1 resident
                pl.BlockSpec((1, HIDDEN_PAD), lambda i, seed: (0, 0)),      # b1 resident
                pl.BlockSpec((HIDDEN_PAD, N_OUT), lambda i, seed: (0, 0)),  # w2 resident
                pl.BlockSpec((1, N_OUT), lambda i, seed: (0, 0)),           # b2 resident
            ],
            out_specs=pl.BlockSpec((tm, N_OUT), lambda i, seed: (i, 0)),
        ),
        compiler_params=pltpu.CompilerParams(
            dimension_semantics=("parallel",),   # v7x: both TCs split the row tiles
        ),
    )(seed_arr, x, w1p, b1p, w2p, b2p)

    return out[:B]


def net_reference(x, w1, b1, w2, b2, seed):
    """Pure-JAX reference using the same counter-based dropout mask."""
    scale = 1.0 / (1.0 - DROP_P)
    h = x.astype(jnp.float32) @ w1 + b1
    seed_u = jnp.asarray(seed, dtype=jnp.uint32)
    keep = _dropout_keep_mask(0, x.shape[0], HIDDEN_PAD, seed_u)[:, :HIDDEN]
    h = jnp.where(jnp.logical_and(keep, h > 0.0), h * scale, 0.0)
    z = h @ w2 + b2
    return 1.0 / (1.0 + jnp.exp(-z))


def init_params(key):
    # Mimic torch.nn.Linear default init: U(-1/sqrt(fan_in), 1/sqrt(fan_in)).
    k1, k2, k3, k4 = jax.random.split(key, 4)
    bound1 = 1.0 / jnp.sqrt(float(N_IN))
    bound2 = 1.0 / jnp.sqrt(float(HIDDEN))
    w1 = jax.random.uniform(k1, (N_IN, HIDDEN), jnp.float32, -bound1, bound1)
    b1 = jax.random.uniform(k2, (HIDDEN,), jnp.float32, -bound1, bound1)
    w2 = jax.random.uniform(k3, (HIDDEN, N_OUT), jnp.float32, -bound2, bound2)
    b2 = jax.random.uniform(k4, (N_OUT,), jnp.float32, -bound2, bound2)
    return w1, b1, w2, b2


if __name__ == "__main__":
    key = jax.random.PRNGKey(0)
    kx, kp, kx2 = jax.random.split(key, 3)
    w1, b1, w2, b2 = init_params(kp)

    # Small batch (single tile).
    B = 8
    x = jax.random.normal(kx, (B, N_IN), dtype=jnp.float32)
    out = jax.block_until_ready(net_forward(x, w1, b1, w2, b2, seed=42))
    ref = net_reference(x, w1, b1, w2, b2, seed=42)
    assert out.shape == (B, N_OUT)
    assert bool(jnp.all((out >= 0.0) & (out <= 1.0)))
    assert bool(jnp.allclose(out, ref, atol=2e-2, rtol=2e-2))

    # Larger batch exercising the multi-tile grid + row padding.
    B2 = 300
    x2 = jax.random.normal(kx2, (B2, N_IN), dtype=jnp.float32)
    out2 = jax.block_until_ready(
        net_forward(x2, w1, b1, w2, b2, seed=7, block_rows=128))
    ref2 = net_reference(x2, w1, b1, w2, b2, seed=7)
    assert out2.shape == (B2, N_OUT)
    assert bool(jnp.allclose(out2, ref2, atol=2e-2, rtol=2e-2))

    print("KERNEL_OK")
</pallas_src>

<mosaic_0001>
module attributes {stable_mosaic.version = 11 : i64} {
  func.func @_net_kernel(%arg0: i32, %arg1: memref<1xi32, #tpu.memory_space<smem>>, %arg2: memref<8x9xf32, #tpu.memory_space<vmem>>, %arg3: memref<9x384xf32, #tpu.memory_space<vmem>>, %arg4: memref<1x384xf32, #tpu.memory_space<vmem>>, %arg5: memref<384x2xf32, #tpu.memory_space<vmem>>, %arg6: memref<1x2xf32, #tpu.memory_space<vmem>>, %arg7: memref<8x2xf32, #tpu.memory_space<vmem>>) attributes {dimension_semantics = [#tpu.dimension_semantics<parallel>], iteration_bounds = array<i64: 1>, scalar_prefetch = 1 : i64, scratch_operands = 0 : i64, tpu.core_type = #tpu.core_type<tc>, window_params = [{transform_indices = @transform_0, window_bounds = array<i64: 8, 9>}, {pipeline_mode = #tpu.pipeline_mode<synchronous>, transform_indices = @transform_1, window_bounds = array<i64: 9, 384>}, {pipeline_mode = #tpu.pipeline_mode<synchronous>, transform_indices = @transform_2, window_bounds = array<i64: 1, 384>}, {pipeline_mode = #tpu.pipeline_mode<synchronous>, transform_indices = @transform_3, window_bounds = array<i64: 384, 2>}, {pipeline_mode = #tpu.pipeline_mode<synchronous>, transform_indices = @transform_4, window_bounds = array<i64: 1, 2>}, {transform_indices = @transform_5, window_bounds = array<i64: 8, 2>}]} {
    %c0 = arith.constant 0 : index
    %c0_0 = arith.constant 0 : index
    %0 = vector.load %arg2[%c0, %c0_0] : memref<8x9xf32, #tpu.memory_space<vmem>>, vector<8x9xf32>
    %c0_1 = arith.constant 0 : index
    %c0_2 = arith.constant 0 : index
    %1 = vector.load %arg3[%c0_1, %c0_2] : memref<9x384xf32, #tpu.memory_space<vmem>>, vector<9x384xf32>
    %cst = arith.constant dense<0.000000e+00> : vector<8x384xf32>
    %2 = tpu.matmul %0, %1, %cst {dimension_numbers = #tpu.dot_dimension_numbers<[1], [0], [0], [1], [0, 0, 1, 1], [], []>} : vector<8x9xf32>, vector<9x384xf32>, vector<8x384xf32> -> vector<8x384xf32>
    %c0_3 = arith.constant 0 : index
    %c0_4 = arith.constant 0 : index
    %3 = vector.load %arg4[%c0_3, %c0_4] : memref<1x384xf32, #tpu.memory_space<vmem>>, vector<1x384xf32>
    %4 = vector.broadcast %3 : vector<1x384xf32> to vector<8x384xf32>
    %5 = arith.addf %2, %4 : vector<8x384xf32>
    %c0_5 = arith.constant 0 : index
    %6 = memref.load %arg1[%c0_5] : memref<1xi32, #tpu.memory_space<smem>>
    %c8_i32 = arith.constant 8 : i32
    %7 = arith.muli %arg0, %c8_i32 : i32
    %8 = tpu.iota {dimensions = array<i32: 0>} : vector<8x384xi32>
    %9 = vector.broadcast %7 : i32 to vector<8x384xi32>
    %10 = arith.addi %8, %9 : vector<8x384xi32>
    %11 = tpu.iota {dimensions = array<i32: 1>} : vector<8x384xi32>
    %c384_i32 = arith.constant 384 : i32
    %12 = vector.broadcast %c384_i32 : i32 to vector<8x384xi32>
    %13 = arith.muli %10, %12 : vector<8x384xi32>
    %14 = arith.addi %13, %11 : vector<8x384xi32>
    %c-1640531527_i32 = arith.constant -1640531527 : i32
    %15 = arith.muli %6, %c-1640531527_i32 : i32
    %16 = vector.broadcast %15 : i32 to vector<8x384xi32>
    %17 = arith.xori %14, %16 : vector<8x384xi32>
    %c16_i32 = arith.constant 16 : i32
    %18 = vector.broadcast %c16_i32 : i32 to vector<8x384xi32>
    %19 = arith.shrui %17, %18 : vector<8x384xi32>
    %20 = arith.xori %17, %19 : vector<8x384xi32>
    %c2146121005_i32 = arith.constant 2146121005 : i32
    %21 = vector.broadcast %c2146121005_i32 : i32 to vector<8x384xi32>
    %22 = arith.muli %20, %21 : vector<8x384xi32>
    %c15_i32 = arith.constant 15 : i32
    %23 = vector.broadcast %c15_i32 : i32 to vector<8x384xi32>
    %24 = arith.shrui %22, %23 : vector<8x384xi32>
    %25 = arith.xori %22, %24 : vector<8x384xi32>
    %c-2073254261_i32 = arith.constant -2073254261 : i32
    %26 = vector.broadcast %c-2073254261_i32 : i32 to vector<8x384xi32>
    %27 = arith.muli %25, %26 : vector<8x384xi32>
    %c16_i32_6 = arith.constant 16 : i32
    %28 = vector.broadcast %c16_i32_6 : i32 to vector<8x384xi32>
    %29 = arith.shrui %27, %28 : vector<8x384xi32>
    %30 = arith.xori %27, %29 : vector<8x384xi32>
    %31 = vector.broadcast %6 : i32 to vector<8x384xi32>
    %32 = arith.addi %30, %31 : vector<8x384xi32>
    %c16_i32_7 = arith.constant 16 : i32
    %33 = vector.broadcast %c16_i32_7 : i32 to vector<8x384xi32>
    %34 = arith.shrui %32, %33 : vector<8x384xi32>
    %35 = arith.xori %32, %34 : vector<8x384xi32>
    %c2146121005_i32_8 = arith.constant 2146121005 : i32
    %36 = vector.broadcast %c2146121005_i32_8 : i32 to vector<8x384xi32>
    %37 = arith.muli %35, %36 : vector<8x384xi32>
    %c15_i32_9 = arith.constant 15 : i32
    %38 = vector.broadcast %c15_i32_9 : i32 to vector<8x384xi32>
    %39 = arith.shrui %37, %38 : vector<8x384xi32>
    %40 = arith.xori %37, %39 : vector<8x384xi32>
    %c-2073254261_i32_10 = arith.constant -2073254261 : i32
    %41 = vector.broadcast %c-2073254261_i32_10 : i32 to vector<8x384xi32>
    %42 = arith.muli %40, %41 : vector<8x384xi32>
    %c16_i32_11 = arith.constant 16 : i32
    %43 = vector.broadcast %c16_i32_11 : i32 to vector<8x384xi32>
    %44 = arith.shrui %42, %43 : vector<8x384xi32>
    %45 = arith.xori %42, %44 : vector<8x384xi32>
    %c429496729_i32 = arith.constant 429496729 : i32
    %46 = vector.broadcast %c429496729_i32 : i32 to vector<8x384xi32>
    %47 = arith.cmpi uge, %45, %46 : vector<8x384xi32>
    %cst_12 = arith.constant 0.000000e+00 : f32
    %48 = vector.broadcast %cst_12 : f32 to vector<8x384xf32>
    %49 = arith.cmpf ogt, %5, %48 : vector<8x384xf32>
    %50 = arith.andi %47, %49 : vector<8x384xi1>
    %cst_13 = arith.constant 0.000000e+00 : f32
    %51 = vector.broadcast %cst_13 : f32 to vector<8x384xf32>
    %52 = arith.select %50, %5, %51 : vector<8x384xi1>, vector<8x384xf32>
    %c0_14 = arith.constant 0 : index
    %c0_15 = arith.constant 0 : index
    %53 = vector.load %arg5[%c0_14, %c0_15] : memref<384x2xf32, #tpu.memory_space<vmem>>, vector<384x2xf32>
    %cst_16 = arith.constant dense<0.000000e+00> : vector<8x2xf32>
    %54 = tpu.matmul %52, %53, %cst_16 {dimension_numbers = #tpu.dot_dimension_numbers<[1], [0], [0], [1], [0, 0, 1, 1], [], []>} : vector<8x384xf32>, vector<384x2xf32>, vector<8x2xf32> -> vector<8x2xf32>
    %c0_17 = arith.constant 0 : index
    %c0_18 = arith.constant 0 : index
    %55 = vector.load %arg6[%c0_17, %c0_18] : memref<1x2xf32, #tpu.memory_space<vmem>>, vector<1x2xf32>
    %56 = vector.broadcast %55 : vector<1x2xf32> to vector<8x2xf32>
    %57 = arith.addf %54, %56 : vector<8x2xf32>
    %cst_19 = arith.constant 0.000000e+00 : f32
    %58 = vector.broadcast %cst_19 : f32 to vector<8x2xf32>
    %59 = arith.subf %58, %57 : vector<8x2xf32>
    %60 = math.exp %59 : vector<8x2xf32>
    %cst_20 = arith.constant 1.000000e+00 : f32
    %61 = vector.broadcast %cst_20 : f32 to vector<8x2xf32>
    %62 = arith.addf %61, %60 : vector<8x2xf32>
    %cst_21 = arith.constant 1.000000e+00 : f32
    %63 = vector.broadcast %cst_21 : f32 to vector<8x2xf32>
    %64 = arith.divf %63, %62 : vector<8x2xf32>
    %c0_22 = arith.constant 0 : index
    %c0_23 = arith.constant 0 : index
    %65 = vector.load %arg7[%c0_22, %c0_23] : memref<8x2xf32, #tpu.memory_space<vmem>>, vector<8x2xf32>
    tpu.vector_store %arg7[%c0_22, %c0_23], %64 {strides = array<i32>} : memref<8x2xf32, #tpu.memory_space<vmem>>, vector<8x2xf32>,
    return
  }
  func.func @transform_0(%arg0: i32, %arg1: memref<1xi32, #tpu.memory_space<smem>>) -> (i32, i32) {
    %c0_i32 = arith.constant 0 : i32
    %c0_i32_0 = arith.constant 0 : i32
    return %arg0, %c0_i32 : i32, i32
  }
  func.func @transform_1(%arg0: i32, %arg1: memref<1xi32, #tpu.memory_space<smem>>) -> (i32, i32) {
    %c0_i32 = arith.constant 0 : i32
    %c0_i32_0 = arith.constant 0 : i32
    %c0_i32_1 = arith.constant 0 : i32
    return %c0_i32, %c0_i32_0 : i32, i32
  }
  func.func @transform_2(%arg0: i32, %arg1: memref<1xi32, #tpu.memory_space<smem>>) -> (i32, i32) {
    %c0_i32 = arith.constant 0 : i32
    %c0_i32_0 = arith.constant 0 : i32
    %c0_i32_1 = arith.constant 0 : i32
    return %c0_i32, %c0_i32_0 : i32, i32
  }
  func.func @transform_3(%arg0: i32, %arg1: memref<1xi32, #tpu.memory_space<smem>>) -> (i32, i32) {
    %c0_i32 = arith.constant 0 : i32
    %c0_i32_0 = arith.constant 0 : i32
    %c0_i32_1 = arith.constant 0 : i32
    return %c0_i32, %c0_i32_0 : i32, i32
  }
  func.func @transform_4(%arg0: i32, %arg1: memref<1xi32, #tpu.memory_space<smem>>) -> (i32, i32) {
    %c0_i32 = arith.constant 0 : i32
    %c0_i32_0 = arith.constant 0 : i32
    %c0_i32_1 = arith.constant 0 : i32
    return %c0_i32, %c0_i32_0 : i32, i32
  }
  func.func @transform_5(%arg0: i32, %arg1: memref<1xi32, #tpu.memory_space<smem>>) -> (i32, i32) {
    %c0_i32 = arith.constant 0 : i32
    %c0_i32_0 = arith.constant 0 : i32
    return %arg0, %c0_i32 : i32, i32
  }
}

</mosaic_0001>

<llo_original>
// kernel: tpu_custom_call.1
$region0: #{tpu_custom_call.1}
  #allocation0 [shape = 'u32[]', space=smem, size = 0x4, offset = 0x4, fixed_abs, tag = 'smem constant byte address 0x4 - core index']
  #allocation1 [shape = 'u32[144,128]{1,0:T(1,128)}', space=vmem, size = 0x12000, scoped, tag = 'internal scratch']
  #allocation2 [shape = 's32[1]{0}', space=sflag, size = 0x4, scoped, tag = 'scoped memory for tpu_custom_call.1']
  #allocation3 [shape = 's32[1]{0:T(128)S(6)}', space=smem, size = 0x200, scoped, tag = 'prefetched SMEM operand 0']
  %s0 = inlined_call_operand.<no memory space> [shape: s32[1], index: 0, kind: input, shape index: {}]
  %s1 = inlined_call_operand.vmem [shape: f32[8,9], index: 1, kind: input, shape index: {}]
  %s2 = inlined_call_operand.vmem [shape: f32[9,384], index: 2, kind: input, shape index: {}]
  %s3 = inlined_call_operand.vmem [shape: f32[1,384], index: 3, kind: input, shape index: {}]
  %s4 = inlined_call_operand.vmem [shape: f32[384,2], index: 4, kind: input, shape index: {}]
  %s5 = inlined_call_operand.vmem [shape: f32[1,2], index: 5, kind: input, shape index: {}]
  %s6 = inlined_call_operand.vmem [shape: f32[8,2], index: 6, kind: output, shape index: {}]
  %s7 = sld [smem:[#allocation0]]
  $region30: #{tpu_custom_call.1} parent=0
    _
  %s9 = ssub.s32 1, %s7
  %s10 = scalar_select 0, %s9, %s7
  %11 = sst [smem:[#allocation3]] %s0
  // Predicated region
  $region2: #{tpu_custom_call.1} parent=0 // pred_check
    _
  $region3: #{tpu_custom_call.1} parent=0 // pred_check_branch
    %13 = sbr.rel (0) target = $region5
  $region4: #{tpu_custom_call.1} parent=0 // pred_region
    _
  $region5: #{tpu_custom_call.1} parent=0 // pred_fallthru
    _
  // Predicated region
  $region6: #{tpu_custom_call.1} parent=0 // pred_check
    _
  $region7: #{tpu_custom_call.1} parent=0 // pred_check_branch
    %15 = sbr.rel (0) target = $region9
  $region8: #{tpu_custom_call.1} parent=0 // pred_region
    _
  $region9: #{tpu_custom_call.1} parent=0 // pred_fallthru
    _
  // Predicated region
  $region10: #{tpu_custom_call.1} parent=0 // pred_check
    _
  $region11: #{tpu_custom_call.1} parent=0 // pred_check_branch
    %17 = sbr.rel (0) target = $region13
  $region12: #{tpu_custom_call.1} parent=0 // pred_region
    _
  $region13: #{tpu_custom_call.1} parent=0 // pred_fallthru
    _
  // Predicated region
  $region14: #{tpu_custom_call.1} parent=0 // pred_check
    _
  $region15: #{tpu_custom_call.1} parent=0 // pred_check_branch
    %19 = sbr.rel (0) target = $region17
  $region16: #{tpu_custom_call.1} parent=0 // pred_region
    _
  $region17: #{tpu_custom_call.1} parent=0 // pred_fallthru
    _
  // Predicated region
  $region18: #{tpu_custom_call.1} parent=0 // pred_check
    _
  $region19: #{tpu_custom_call.1} parent=0 // pred_check_branch
    %21 = sbr.rel (0) target = $region21
  $region20: #{tpu_custom_call.1} parent=0 // pred_region
    _
  $region21: #{tpu_custom_call.1} parent=0 // pred_fallthru
    _
  %v22 = vld [vmem:[%s1] sm:$0xff]
  %v23 = vld [vmem:[%s2] sm:$0xff]
  %v24 = vld [vmem:[%s2 + $0x8] sm:$0xff]
  %v25 = vld [vmem:[%s2 + $0x10] sm:$0xff]
  %v26 = vld [vmem:[%s2 + $0x18] sm:$0x1]
  %v27 = vld [vmem:[%s2 + $0x20] sm:$0x1]
  %v28 = vld [vmem:[%s2 + $0x28] sm:$0x1]
  %v29 = vld [vmem:[%s3] sm:$0x7]
  %v31 = vlaneseq
  %v32 = vshrl.u32 %v31, 7
  %v33 = vsub.s32 0, %v32
  %v34 = vrot.slane %v29, %v33
  %v35 = vlaneseq
  %v36 = vshrl.u32 %v35, 7
  %v37 = vsub.s32 1, %v36
  %v38 = vrot.slane %v29, %v37
  %v39 = vlaneseq
  %v40 = vshrl.u32 %v39, 7
  %v41 = vsub.s32 2, %v40
  %v42 = vrot.slane %v29, %v41
  %vm46 = vcmask 72704
  %v48 = vsel %vm46, %v22, 0
  %vm50 = vcmask 1040384
  %v52 = vsel %vm50, %v26, 0
  %v55 = vsel %vm50, %v27, 0
  %v58 = vsel %vm50, %v28, 0
  %60 = vmatprep.subr.mxu0 0.0
  %61 = vmatpush1.msra.mxu0 0.0
  %62 = vmatprep.subr.mxu0 0.0
  %63 = vmatpush1.msra.mxu0 0.0
  %64 = vmatprep.subr.mxu0 0.0
  %65 = vmatpush1.msra.mxu0 0.0
  %66 = vmatprep.subr.mxu0 0.0
  %67 = vmatpush1.msra.mxu0 0.0
  %68 = vmatprep.subr.mxu0 0.0
  %69 = vmatpush1.msra.mxu0 0.0
  %70 = vmatprep.subr.mxu0 0.0
  %71 = vmatpush1.msra.mxu0 0.0
  %72 = vmatprep.subr.mxu0 0.0
  %73 = vmatpush1.msra.mxu0 0.0
  %74 = vmatprep.subr.mxu0 0.0
  %75 = vmatpush1.msra.mxu0 0.0
  %76 = vmatprep.subr.mxu0 0.0
  %77 = vmatpush1.msra.mxu0 0.0
  %78 = vmatprep.subr.mxu0 0.0
  %79 = vmatpush1.msra.mxu0 0.0
  %80 = vmatprep.subr.mxu0 0.0
  %81 = vmatpush1.msra.mxu0 0.0
  %82 = vmatprep.subr.mxu0 0.0
  %83 = vmatpush1.msra.mxu0 0.0
  %84 = vmatprep.subr.mxu0 0.0
  %85 = vmatpush1.msra.mxu0 0.0
  %86 = vmatprep.subr.mxu0 0.0
  %87 = vmatpush1.msra.mxu0 0.0
  %88 = vmatprep.subr.mxu0 %v55
  %89 = vmatpush1.msra.mxu0 %v52
  %90 = vmatprep.subr.mxu0 %v24
  %91 = vmatpush1.msra.mxu0 %v23
  %92 = vmatprep.subr.mxu0 0.0
  %93 = vmatpush2.msra.mxu0 0.0
  %94 = vmatprep.subr.mxu0 0.0
  %95 = vmatpush2.msra.mxu0 0.0
  %96 = vmatprep.subr.mxu0 0.0
  %97 = vmatpush2.msra.mxu0 0.0
  %98 = vmatprep.subr.mxu0 0.0
  %99 = vmatpush2.msra.mxu0 0.0
  %100 = vmatprep.subr.mxu0 0.0
  %101 = vmatpush2.msra.mxu0 0.0
  %102 = vmatprep.subr.mxu0 0.0
  %103 = vmatpush2.msra.mxu0 0.0
  %104 = vmatprep.subr.mxu0 0.0
  %105 = vmatpush2.msra.mxu0 0.0
  %106 = vmatprep.subr.mxu0 0.0
  %107 = vmatpush2.msra.mxu0 0.0
  %108 = vmatprep.subr.mxu0 0.0
  %109 = vmatpush2.msra.mxu0 0.0
  %110 = vmatprep.subr.mxu0 0.0
  %111 = vmatpush2.msra.mxu0 0.0
  %112 = vmatprep.subr.mxu0 0.0
  %113 = vmatpush2.msra.mxu0 0.0
  %114 = vmatprep.subr.mxu0 0.0
  %115 = vmatpush2.msra.mxu0 0.0
  %116 = vmatprep.subr.mxu0 0.0
  %117 = vmatpush2.msra.mxu0 0.0
  %118 = vmatprep.subr.mxu0 0.0
  %119 = vmatpush2.msra.mxu0 0.0
  %120 = vmatprep.subr.mxu0 0.0
  %121 = vmatpush2.msra.mxu0 0.0
  %122 = vmatprep.subr.mxu0 0.0
  %123 = vmatpush2.msra.mxu0 0.0
  %124 = vmatprep.mubr.f32.mxu0 0.0
  %125 = vmatmul.mubr.f32.gmra.mxu0 %v48
  %v126 = vpop.f32.mrf.mxu0
  %v127 = vadd.f32 %v34, %v126
  %v128 = vpop.f32.mrf.mxu0
  %v129 = vadd.f32 %v38, %v128
  %130 = vdwg.mxu0
  %131 = vmatprep.subr.mxu0 0.0
  %132 = vmatpush1.msra.mxu0 0.0
  %133 = vmatprep.subr.mxu0 0.0
  %134 = vmatpush1.msra.mxu0 0.0
  %135 = vmatprep.subr.mxu0 0.0
  %136 = vmatpush1.msra.mxu0 0.0
  %137 = vmatprep.subr.mxu0 0.0
  %138 = vmatpush1.msra.mxu0 0.0
  %139 = vmatprep.subr.mxu0 0.0
  %140 = vmatpush1.msra.mxu0 0.0
  %141 = vmatprep.subr.mxu0 0.0
  %142 = vmatpush1.msra.mxu0 0.0
  %143 = vmatprep.subr.mxu0 0.0
  %144 = vmatpush1.msra.mxu0 0.0
  %145 = vmatprep.subr.mxu0 0.0
  %146 = vmatpush1.msra.mxu0 0.0
  %147 = vmatprep.subr.mxu0 0.0
  %148 = vmatpush1.msra.mxu0 0.0
  %149 = vmatprep.subr.mxu0 0.0
  %150 = vmatpush1.msra.mxu0 0.0
  %151 = vmatprep.subr.mxu0 0.0
  %152 = vmatpush1.msra.mxu0 0.0
  %153 = vmatprep.subr.mxu0 0.0
  %154 = vmatpush1.msra.mxu0 0.0
  %155 = vmatprep.subr.mxu0 0.0
  %156 = vmatpush1.msra.mxu0 0.0
  %157 = vmatprep.subr.mxu0 0.0
  %158 = vmatpush1.msra.mxu0 0.0
  %159 = vmatprep.subr.mxu0 0.0
  %160 = vmatpush1.msra.mxu0 %v58
  %161 = vmatprep.subr.mxu0 0.0
  %162 = vmatpush1.msra.mxu0 %v25
  %163 = vmatprep.subr.mxu0 0.0
  %164 = vmatpush2.msra.mxu0 0.0
  %165 = vmatprep.subr.mxu0 0.0
  %166 = vmatpush2.msra.mxu0 0.0
  %167 = vmatprep.subr.mxu0 0.0
  %168 = vmatpush2.msra.mxu0 0.0
  %169 = vmatprep.subr.mxu0 0.0
  %170 = vmatpush2.msra.mxu0 0.0
  %171 = vmatprep.subr.mxu0 0.0
  %172 = vmatpush2.msra.mxu0 0.0
  %173 = vmatprep.subr.mxu0 0.0
  %174 = vmatpush2.msra.mxu0 0.0
  %175 = vmatprep.subr.mxu0 0.0
  %176 = vmatpush2.msra.mxu0 0.0
  %177 = vmatprep.subr.mxu0 0.0
  %178 = vmatpush2.msra.mxu0 0.0
  %179 = vmatprep.subr.mxu0 0.0
  %180 = vmatpush2.msra.mxu0 0.0
  %181 = vmatprep.subr.mxu0 0.0
  %182 = vmatpush2.msra.mxu0 0.0
  %183 = vmatprep.subr.mxu0 0.0
  %184 = vmatpush2.msra.mxu0 0.0
  %185 = vmatprep.subr.mxu0 0.0
  %186 = vmatpush2.msra.mxu0 0.0
  %187 = vmatprep.subr.mxu0 0.0
  %188 = vmatpush2.msra.mxu0 0.0
  %189 = vmatprep.subr.mxu0 0.0
  %190 = vmatpush2.msra.mxu0 0.0
  %191 = vmatprep.subr.mxu0 0.0
  %192 = vmatpush2.msra.mxu0 0.0
  %193 = vmatprep.subr.mxu0 0.0
  %194 = vmatpush2.msra.mxu0 0.0
  %195 = vmatprep.mubr.f32.mxu0 0.0
  %196 = vmatmul.mubr.f32.gmra.mxu0 %v48
  %v197 = vpop.f32.mrf.mxu0
  %v198 = vadd.f32 %v42, %v197
  %v199 = vpop.f32.mrf.mxu0
  %200 = vdwg.mxu0
  %s201 = sld [smem:[#allocation3]]
  %s202 = smul.u32 0, 8
  %v203 = vlaneseq
  %v204 = vshrl.u32 %v203, 7
  %v205 = vstv %s202
  %v206 = vadd.s32 %v204, %v205
  %v207 = vlaneseq
  %v208 = vand.u32 %v207, 127
  %v209 = vadd.s32 %v208, 128
  %v210 = vadd.s32 %v208, 256
  %v211 = vmul.u32 %v206, 384
  %v212 = vadd.s32 %v211, %v208
  %v213 = vadd.s32 %v211, %v209
  %v214 = vadd.s32 %v211, %v210
  %s215 = smul.u32 %s201, 2654435769
  %v216 = vstv %s215
  %v217 = vxor.u32 %v212, %v216
  %v218 = vxor.u32 %v213, %v216
  %v219 = vxor.u32 %v214, %v216
  %v220 = vshrl.u32 %v217, 16
  %v221 = vshrl.u32 %v218, 16
  %v222 = vshrl.u32 %v219, 16
  %v223 = vxor.u32 %v217, %v220
  %v224 = vxor.u32 %v218, %v221
  %v225 = vxor.u32 %v219, %v222
  %v226 = vmul.u32 %v223, 2146121005
  %v227 = vmul.u32 %v224, 2146121005
  %v228 = vmul.u32 %v225, 2146121005
  %v229 = vshrl.u32 %v226, 15
  %v230 = vshrl.u32 %v227, 15
  %v231 = vshrl.u32 %v228, 15
  %v232 = vxor.u32 %v226, %v229
  %v233 = vxor.u32 %v227, %v230
  %v234 = vxor.u32 %v228, %v231
  %v235 = vmul.u32 %v232, 2221713035
  %v236 = vmul.u32 %v233, 2221713035
  %v237 = vmul.u32 %v234, 2221713035
  %v238 = vshrl.u32 %v235, 16
  %v239 = vshrl.u32 %v236, 16
  %v240 = vshrl.u32 %v237, 16
  %v241 = vxor.u32 %v235, %v238
  %v242 = vxor.u32 %v236, %v239
  %v243 = vxor.u32 %v237, %v240
  %v244 = vstv %s201
  %v245 = vadd.s32 %v241, %v244
  %v246 = vadd.s32 %v242, %v244
  %v247 = vadd.s32 %v243, %v244
  %v248 = vshrl.u32 %v245, 16
  %v249 = vshrl.u32 %v246, 16
  %v250 = vshrl.u32 %v247, 16
  %v251 = vxor.u32 %v245, %v248
  %v252 = vxor.u32 %v246, %v249
  %v253 = vxor.u32 %v247, %v250
  %v254 = vmul.u32 %v251, 2146121005
  %v255 = vmul.u32 %v252, 2146121005
  %v256 = vmul.u32 %v253, 2146121005
  %v257 = vshrl.u32 %v254, 15
  %v258 = vshrl.u32 %v255, 15
  %v259 = vshrl.u32 %v256, 15
  %v260 = vxor.u32 %v254, %v257
  %v261 = vxor.u32 %v255, %v258
  %v262 = vxor.u32 %v256, %v259
  %v263 = vmul.u32 %v260, 2221713035
  %v264 = vmul.u32 %v261, 2221713035
  %v265 = vmul.u32 %v262, 2221713035
  %v266 = vshrl.u32 %v263, 16
  %v267 = vshrl.u32 %v264, 16
  %v268 = vshrl.u32 %v265, 16
  %v269 = vxor.u32 %v263, %v266
  %v270 = vxor.u32 %v264, %v267
  %v271 = vxor.u32 %v265, %v268
  %vm272 = vcmp.ge.u32.totalorder %v269, 429496729
  %vm273 = vcmp.ge.u32.totalorder %v270, 429496729
  %vm274 = vcmp.ge.u32.totalorder %v271, 429496729
  %vm275 = vcmp.gt.f32.partialorder %v127, 0.0
  %vm276 = vcmp.gt.f32.partialorder %v129, 0.0
  %vm277 = vcmp.gt.f32.partialorder %v198, 0.0
  %vm278 = vmand %vm272, %vm275
  %vm279 = vmand %vm273, %vm276
  %vm280 = vmand %vm274, %vm277
  %v281 = vsel %vm278, %v127, 0.0
  %v282 = vsel %vm279, %v129, 0.0
  %v283 = vsel %vm280, %v198, 0.0
  %v284 = vld [vmem:[%s4] sm:$0xff]
  %v285 = vld [vmem:[%s4 + $0x8] sm:$0xff]
  %v286 = vld [vmem:[%s4 + $0x10] sm:$0xff]
  %v287 = vld [vmem:[%s4 + $0x18] sm:$0xff]
  %v288 = vld [vmem:[%s4 + $0x20] sm:$0xff]
  %v289 = vld [vmem:[%s4 + $0x28] sm:$0xff]
  %v290 = vld [vmem:[%s4 + $0x30] sm:$0xff]
  %v291 = vld [vmem:[%s4 + $0x38] sm:$0xff]
  %v292 = vld [vmem:[%s4 + $0x40] sm:$0xff]
  %v293 = vld [vmem:[%s4 + $0x48] sm:$0xff]
  %v294 = vld [vmem:[%s4 + $0x50] sm:$0xff]
  %v295 = vld [vmem:[%s4 + $0x58] sm:$0xff]
  %v296 = vld [vmem:[%s4 + $0x60] sm:$0xff]
  %v297 = vld [vmem:[%s4 + $0x68] sm:$0xff]
  %v298 = vld [vmem:[%s4 + $0x70] sm:$0xff]
  %v299 = vld [vmem:[%s4 + $0x78] sm:$0xff]
  %v300 = vld [vmem:[%s4 + $0x80] sm:$0xff]
  %v301 = vld [vmem:[%s4 + $0x88] sm:$0xff]
  %v302 = vld [vmem:[%s4 + $0x90] sm:$0xff]
  %v303 = vld [vmem:[%s4 + $0x98] sm:$0xff]
  %v304 = vld [vmem:[%s4 + $0xa0] sm:$0xff]
  %v305 = vld [vmem:[%s4 + $0xa8] sm:$0xff]
  %v306 = vld [vmem:[%s4 + $0xb0] sm:$0xff]
  %v307 = vld [vmem:[%s4 + $0xb8] sm:$0xff]
  %v308 = vld [vmem:[%s4 + $0xc0] sm:$0xff]
  %v309 = vld [vmem:[%s4 + $0xc8] sm:$0xff]
  %v310 = vld [vmem:[%s4 + $0xd0] sm:$0xff]
  %v311 = vld [vmem:[%s4 + $0xd8] sm:$0xff]
  %v312 = vld [vmem:[%s4 + $0xe0] sm:$0xff]
  %v313 = vld [vmem:[%s4 + $0xe8] sm:$0xff]
  %v314 = vld [vmem:[%s4 + $0xf0] sm:$0xff]
  %v315 = vld [vmem:[%s4 + $0xf8] sm:$0xff]
  %v316 = vld [vmem:[%s4 + $0x100] sm:$0xff]
  %v317 = vld [vmem:[%s4 + $0x108] sm:$0xff]
  %v318 = vld [vmem:[%s4 + $0x110] sm:$0xff]
  %v319 = vld [vmem:[%s4 + $0x118] sm:$0xff]
  %v320 = vld [vmem:[%s4 + $0x120] sm:$0xff]
  %v321 = vld [vmem:[%s4 + $0x128] sm:$0xff]
  %v322 = vld [vmem:[%s4 + $0x130] sm:$0xff]
  %v323 = vld [vmem:[%s4 + $0x138] sm:$0xff]
  %v324 = vld [vmem:[%s4 + $0x140] sm:$0xff]
  %v325 = vld [vmem:[%s4 + $0x148] sm:$0xff]
  %v326 = vld [vmem:[%s4 + $0x150] sm:$0xff]
  %v327 = vld [vmem:[%s4 + $0x158] sm:$0xff]
  %v328 = vld [vmem:[%s4 + $0x160] sm:$0xff]
  %v329 = vld [vmem:[%s4 + $0x168] sm:$0xff]
  %v330 = vld [vmem:[%s4 + $0x170] sm:$0xff]
  %v331 = vld [vmem:[%s4 + $0x178] sm:$0xff]
  %v332 = vld [vmem:[%s5] sm:$0x1]
  %v334 = vlaneseq
  %v335 = vshrl.u32 %v334, 7
  %v336 = vsub.s32 0, %v335
  %v337 = vrot.slane %v332, %v336
  %339 = vmatprep.subr.mxu0 0.0
  %340 = vmatpush1.msra.mxu0 %v299
  %341 = vmatprep.subr.mxu0 0.0
  %342 = vmatpush1.msra.mxu0 %v298
  %343 = vmatprep.subr.mxu0 0.0
  %344 = vmatpush1.msra.mxu0 %v297
  %345 = vmatprep.subr.mxu0 0.0
  %346 = vmatpush1.msra.mxu0 %v296
  %347 = vmatprep.subr.mxu0 0.0
  %348 = vmatpush1.msra.mxu0 %v295
  %349 = vmatprep.subr.mxu0 0.0
  %350 = vmatpush1.msra.mxu0 %v294
  %351 = vmatprep.subr.mxu0 0.0
  %352 = vmatpush1.msra.mxu0 %v293
  %353 = vmatprep.subr.mxu0 0.0
  %354 = vmatpush1.msra.mxu0 %v292
  %355 = vmatprep.subr.mxu0 0.0
  %356 = vmatpush1.msra.mxu0 %v291
  %357 = vmatprep.subr.mxu0 0.0
  %358 = vmatpush1.msra.mxu0 %v290
  %359 = vmatprep.subr.mxu0 0.0
  %360 = vmatpush1.msra.mxu0 %v289
  %361 = vmatprep.subr.mxu0 0.0
  %362 = vmatpush1.msra.mxu0 %v288
  %363 = vmatprep.subr.mxu0 0.0
  %364 = vmatpush1.msra.mxu0 %v287
  %365 = vmatprep.subr.mxu0 0.0
  %366 = vmatpush1.msra.mxu0 %v286
  %367 = vmatprep.subr.mxu0 0.0
  %368 = vmatpush1.msra.mxu0 %v285
  %369 = vmatprep.subr.mxu0 0.0
  %370 = vmatpush1.msra.mxu0 %v284
  %371 = vmatprep.subr.mxu0 0.0
  %372 = vmatpush2.msra.mxu0 %v315
  %373 = vmatprep.subr.mxu0 0.0
  %374 = vmatpush2.msra.mxu0 %v314
  %375 = vmatprep.subr.mxu0 0.0
  %376 = vmatpush2.msra.mxu0 %v313
  %377 = vmatprep.subr.mxu0 0.0
  %378 = vmatpush2.msra.mxu0 %v312
  %379 = vmatprep.subr.mxu0 0.0
  %380 = vmatpush2.msra.mxu0 %v311
  %381 = vmatprep.subr.mxu0 0.0
  %382 = vmatpush2.msra.mxu0 %v310
  %383 = vmatprep.subr.mxu0 0.0
  %384 = vmatpush2.msra.mxu0 %v309
  %385 = vmatprep.subr.mxu0 0.0
  %386 = vmatpush2.msra.mxu0 %v308
  %387 = vmatprep.subr.mxu0 0.0
  %388 = vmatpush2.msra.mxu0 %v307
  %389 = vmatprep.subr.mxu0 0.0
  %390 = vmatpush2.msra.mxu0 %v306
  %391 = vmatprep.subr.mxu0 0.0
  %392 = vmatpush2.msra.mxu0 %v305
  %393 = vmatprep.subr.mxu0 0.0
  %394 = vmatpush2.msra.mxu0 %v304
  %395 = vmatprep.subr.mxu0 0.0
  %396 = vmatpush2.msra.mxu0 %v303
  %397 = vmatprep.subr.mxu0 0.0
  %398 = vmatpush2.msra.mxu0 %v302
  %399 = vmatprep.subr.mxu0 0.0
  %400 = vmatpush2.msra.mxu0 %v301
  %401 = vmatprep.subr.mxu0 0.0
  %402 = vmatpush2.msra.mxu0 %v300
  %403 = vmatprep.mubr.f32.mxu0 %v282
  %404 = vmatmul.mubr.f32.gmra.mxu0 %v281
  %v405 = vpop.f32.mrf.mxu0
  %v406 = vadd.f32 %v337, %v405
  %v407 = vpop.f32.mrf.mxu0
  %408 = vdwg.mxu0
  %409 = vmatprep.subr.mxu0 0.0
  %410 = vmatpush1.msra.mxu0 %v331
  %411 = vmatprep.subr.mxu0 0.0
  %412 = vmatpush1.msra.mxu0 %v330
  %413 = vmatprep.subr.mxu0 0.0
  %414 = vmatpush1.msra.mxu0 %v329
  %415 = vmatprep.subr.mxu0 0.0
  %416 = vmatpush1.msra.mxu0 %v328
  %417 = vmatprep.subr.mxu0 0.0
  %418 = vmatpush1.msra.mxu0 %v327
  %419 = vmatprep.subr.mxu0 0.0
  %420 = vmatpush1.msra.mxu0 %v326
  %421 = vmatprep.subr.mxu0 0.0
  %422 = vmatpush1.msra.mxu0 %v325
  %423 = vmatprep.subr.mxu0 0.0
  %424 = vmatpush1.msra.mxu0 %v324
  %425 = vmatprep.subr.mxu0 0.0
  %426 = vmatpush1.msra.mxu0 %v323
  %427 = vmatprep.subr.mxu0 0.0
  %428 = vmatpush1.msra.mxu0 %v322
  %429 = vmatprep.subr.mxu0 0.0
  %430 = vmatpush1.msra.mxu0 %v321
  %431 = vmatprep.subr.mxu0 0.0
  %432 = vmatpush1.msra.mxu0 %v320
  %433 = vmatprep.subr.mxu0 0.0
  %434 = vmatpush1.msra.mxu0 %v319
  %435 = vmatprep.subr.mxu0 0.0
  %436 = vmatpush1.msra.mxu0 %v318
  %437 = vmatprep.subr.mxu0 0.0
  %438 = vmatpush1.msra.mxu0 %v317
  %439 = vmatprep.subr.mxu0 0.0
  %440 = vmatpush1.msra.mxu0 %v316
  %441 = vmatprep.subr.mxu0 0.0
  %442 = vmatpush2.msra.mxu0 0.0
  %443 = vmatprep.subr.mxu0 0.0
  %444 = vmatpush2.msra.mxu0 0.0
  %445 = vmatprep.subr.mxu0 0.0
  %446 = vmatpush2.msra.mxu0 0.0
  %447 = vmatprep.subr.mxu0 0.0
  %448 = vmatpush2.msra.mxu0 0.0
  %449 = vmatprep.subr.mxu0 0.0
  %450 = vmatpush2.msra.mxu0 0.0
  %451 = vmatprep.subr.mxu0 0.0
  %452 = vmatpush2.msra.mxu0 0.0
  %453 = vmatprep.subr.mxu0 0.0
  %454 = vmatpush2.msra.mxu0 0.0
  %455 = vmatprep.subr.mxu0 0.0
  %456 = vmatpush2.msra.mxu0 0.0
  %457 = vmatprep.subr.mxu0 0.0
  %458 = vmatpush2.msra.mxu0 0.0
  %459 = vmatprep.subr.mxu0 0.0
  %460 = vmatpush2.msra.mxu0 0.0
  %461 = vmatprep.subr.mxu0 0.0
  %462 = vmatpush2.msra.mxu0 0.0
  %463 = vmatprep.subr.mxu0 0.0
  %464 = vmatpush2.msra.mxu0 0.0
  %465 = vmatprep.subr.mxu0 0.0
  %466 = vmatpush2.msra.mxu0 0.0
  %467 = vmatprep.subr.mxu0 0.0
  %468 = vmatpush2.msra.mxu0 0.0
  %469 = vmatprep.subr.mxu0 0.0
  %470 = vmatpush2.msra.mxu0 0.0
  %471 = vmatprep.subr.mxu0 0.0
  %472 = vmatpush2.msra.mxu0 0.0
  %473 = vmatprep.mubr.f32.mxu0 0.0
  %474 = vmatmul.mubr.f32.gmra.mxu0 %v283
  %v475 = vpop.f32.mrf.mxu0
  %v476 = vadd.f32 %v406, %v475
  %v477 = vpop.f32.mrf.mxu0
  %478 = vdwg.mxu0
  %v479 = vsub.f32 0.0, %v476
  %v480 = vmul.f32 %v479, 1.442695
  %v481 = vpow.pop %v480
  %v482 = vadd.f32 %v481, 1.0
  %v483 = vrcp.pop %v482
  %v484 = vmul.f32 1.0, %v483
  %vm485 = vcmask 15360
  %486 = vst.msk [vmem:[%s6] sm:$0xff] %vm485, %v484
  // Predicated region
  $region22: #{tpu_custom_call.1} parent=0 // pred_check
    _
  $region23: #{tpu_custom_call.1} parent=0 // pred_check_branch
    %488 = sbr.rel (0) target = $region25
  $region24: #{tpu_custom_call.1} parent=0 // pred_region
    _
  $region25: #{tpu_custom_call.1} parent=0 // pred_fallthru
    _
  // Predicated region
  $region26: #{tpu_custom_call.1} parent=0 // pred_check
    _
  $region27: #{tpu_custom_call.1} parent=0 // pred_check_branch
    %490 = sbr.rel (0) target = $region29
  $region28: #{tpu_custom_call.1} parent=0 // pred_region
    _
  $region29: #{tpu_custom_call.1} parent=0 // pred_fallthru
    _

</llo_original>
